<compile_context>
chip_gen: v7x
topology: tpu7x:2x2x1
jax: 0.10.0
libtpu: 0.0.40
codegen_flags: <defaults>
</compile_context>

<pallas_src>
import functools
import math

import jax
import jax.numpy as jnp
from jax import lax
from jax.experimental import pallas as pl
from jax.experimental.pallas import tpu as pltpu


# ---------------------------------------------------------------------------
# Parameter / buffer setup (plain JAX glue, deterministic)
# ---------------------------------------------------------------------------
def make_positional_encoding_table(d_model: int, max_len: int = 5000) -> jnp.ndarray:
    """Reproduces the PyTorch buffer `pe` (squeezed to [max_len, d_model], f32)."""
    assert d_model % 2 == 0, "d_model must be even (same assumption as the PyTorch module)"
    position = jnp.arange(max_len, dtype=jnp.float32)[:, None]          # [L, 1]
    div_term = jnp.exp(
        jnp.arange(0, d_model, 2, dtype=jnp.float32)
        * (-math.log(10000.0) / d_model)
    )                                                                    # [D/2]
    angles = position * div_term                                         # [L, D/2]
    pe = jnp.zeros((max_len, d_model), dtype=jnp.float32)
    pe = pe.at[:, 0::2].set(jnp.sin(angles))
    pe = pe.at[:, 1::2].set(jnp.cos(angles))
    return pe                                                            # [L, D]


# ---------------------------------------------------------------------------
# Stateless dropout bits: murmur3-style finalizer on (global element id, seed).
# Pure jnp int32 ops -> lowers on TPU (VPU) and runs in interpret mode.
# ---------------------------------------------------------------------------
def _i32_const(v: int) -> jnp.int32:
    return jnp.int32(v - (1 << 32) if v >= (1 << 31) else v)


_GOLDEN = 0x9E3779B9
_FMIX_C1 = 0x85EBCA6B
_FMIX_C2 = 0xC2B2AE35


def _shr_logical(h, s: int):
    # Logical right shift of int32 values: arithmetic shift + mask of the low (32-s) bits.
    return (h >> s) & jnp.int32((1 << (32 - s)) - 1)


def _uniform_bits31(gid, seed):
    """Hash (gid, seed) -> non-negative int32 uniform in [0, 2^31). int32 wraparound is intended."""
    h = gid + seed * _i32_const(_GOLDEN)
    h = h ^ _shr_logical(h, 16)
    h = h * _i32_const(_FMIX_C1)
    h = h ^ _shr_logical(h, 13)
    h = h * _i32_const(_FMIX_C2)
    h = h ^ _shr_logical(h, 16)
    return h & jnp.int32(0x7FFFFFFF)


def _keep_threshold(p_drop: float) -> jnp.int32:
    return jnp.int32(min(int(p_drop * (1 << 31)), (1 << 31) - 1))


def dropout_keep_mask(seed: int, rows: int, cols: int, p_drop: float) -> jnp.ndarray:
    """Reference keep-mask — identical math to the in-kernel path (tiling-invariant)."""
    r = jnp.arange(rows, dtype=jnp.int32)[:, None]
    c = jnp.arange(cols, dtype=jnp.int32)[None, :]
    gid = r * jnp.int32(cols) + c
    return _uniform_bits31(gid, jnp.int32(seed)) >= _keep_threshold(p_drop)


# ---------------------------------------------------------------------------
# Tile-size selection (generation-aware: derived from VMEM capacity + dtype)
# ---------------------------------------------------------------------------
def _vmem_capacity_bytes() -> int:
    try:
        return int(pltpu.get_tpu_info().vmem_capacity_bytes)
    except Exception:
        return 64 * 1024 * 1024  # assume the smallest (v7x) if the query fails


def _sublane_pack(dtype) -> int:
    # 8 rows per sublane tile for 32-bit, 16 for bf16, 32 for int8/fp8.
    return max(8, 32 // max(1, jnp.dtype(dtype).itemsize))


def _choose_tile_s(S: int, B: int, D: int, dtype, vmem_cap: int) -> int:
    itemsize = jnp.dtype(dtype).itemsize
    pack = _sublane_pack(dtype)
    # Per-tile budget: larger on 128 MiB parts (v5e/v6e) -> fewer grid steps on long
    # sequences; conservative 2 MiB on 64 MiB parts (v7x).  Double-buffered footprint is
    # ~4x this, well inside every generation's scoped limit we request below.
    per_tile_budget = (8 if vmem_cap >= 128 * 1024 * 1024 else 2) * 1024 * 1024
    row_bytes = max(1, B * D * itemsize)
    ts = max(1, per_tile_budget // row_bytes)
    # Guarantee >= 2 grid tiles when the sequence is long enough to split: lets v7x shard
    # the "parallel" axis across both TensorCores; costs ~one 0.35us step elsewhere.
    if ts >= S and S >= 2 * pack:
        ts = (S + 1) // 2
    return int(min(ts, S))


# ---------------------------------------------------------------------------
# Pallas kernels (x/out presented as lane/sublane-dense 2-D [rows, D] tiles)
# ---------------------------------------------------------------------------
def _pe_add_kernel(x_ref, pe_ref, o_ref, *, batch: int):
    pe = pe_ref[...]                                   # (ts, D) f32
    if batch > 1:
        pe = jnp.repeat(pe, batch, axis=0)             # (ts*B, D): sublane repeat
    o_ref[...] = (x_ref[...].astype(jnp.float32) + pe).astype(o_ref.dtype)


def _pe_add_dropout_kernel(seed_ref, x_ref, pe_ref, o_ref, *, batch: int, p_drop: float):
    pe = pe_ref[...]                                   # (ts, D) f32
    if batch > 1:
        pe = jnp.repeat(pe, batch, axis=0)             # (ts*B, D)
    y = x_ref[...].astype(jnp.float32) + pe            # add in f32 (VPU has slack)

    rows, cols = y.shape                               # static block dims
    row0 = pl.program_id(0) * rows                     # global flat-row offset of this tile
    r = lax.broadcasted_iota(jnp.int32, (rows, cols), 0) + row0
    c = lax.broadcasted_iota(jnp.int32, (rows, cols), 1)
    gid = r * jnp.int32(cols) + c                      # global element id -> mask is
    bits = _uniform_bits31(gid, seed_ref[0])           # independent of tiling / generation
    keep = bits >= _keep_threshold(p_drop)
    scale = jnp.float32(1.0 / (1.0 - p_drop))
    o_ref[...] = jnp.where(keep, y * scale, jnp.float32(0.0)).astype(o_ref.dtype)


# ---------------------------------------------------------------------------
# Wrapper
# ---------------------------------------------------------------------------
def positional_encoding(
    x: jnp.ndarray,
    pe_table: jnp.ndarray,
    *,
    dropout_p: float = 0.1,
    training: bool = False,
    seed: int = 0,
    tile_s: int | None = None,
) -> jnp.ndarray:
    """x: [seq_len, batch, d_model] -> same shape (== PositionalEncoding.forward).

    NOTE: in the composed CTransformer, the eval-mode add should be left to XLA fusion
    (`x + pe[:S, None, :]`) rather than a standalone kernel call; the Pallas eval path here
    exists so the kernel is testable standalone and reaches the streaming HBM roofline.
    """
    assert 0.0 <= dropout_p < 1.0
    S, B, D = x.shape
    assert pe_table.shape[0] >= S and pe_table.shape[1] == D

    vmem_cap = _vmem_capacity_bytes()
    ts = int(tile_s) if tile_s is not None else _choose_tile_s(S, B, D, x.dtype, vmem_cap)
    ts = max(1, min(ts, S))
    pack = _sublane_pack(x.dtype)
    if ts < S:
        # Keep the pe block's sublane dim (ts) and the x block's rows (ts*B) aligned to the
        # dtype's sublane packing; rounding down only adds tiles, never breaks correctness.
        ts = max(pack, (ts // pack) * pack)
        ts = min(ts, S)
    num_tiles = int(pl.cdiv(S, ts))
    block_rows = ts * B

    # Lane/sublane-dense 2-D view: rows = seq*batch (free reshape of contiguous [S, B, D]).
    x_flat = x.reshape(S * B, D)

    if num_tiles == 1:
        # Single tile: make every block equal the full array dims (tiny slice; only taken
        # for short sequences where the whole thing fits in one block anyway).
        pe_in = pe_table[:S].astype(jnp.float32)
    else:
        # Tiled: pass the full f32 table straight through — the (ts, D) BlockSpec only ever
        # DMAs rows actually indexed by the grid, so no wrapper-side slice/convert round trip.
        pe_in = pe_table.astype(jnp.float32)

    compiler_params = pltpu.CompilerParams(
        # Seq tiles are independent -> shard across both TCs on v7x (neutral on v5e/v6e).
        dimension_semantics=("parallel",),
        # 64 MiB on 128 MiB-VMEM parts (v5e/v6e; lifts v5e's 16 MiB default scoped limit),
        # 32 MiB on 64 MiB parts (v7x).
        vmem_limit_bytes=(64 if vmem_cap >= 128 * 1024 * 1024 else 32) * 1024 * 1024,
    )

    if not training or dropout_p == 0.0:
        # Eval mode: dropout is the identity (matches nn.Dropout.eval()).
        kernel = functools.partial(_pe_add_kernel, batch=B)
        out_flat = pl.pallas_call(
            kernel,
            out_shape=jax.ShapeDtypeStruct((S * B, D), x.dtype),
            grid_spec=pltpu.PrefetchScalarGridSpec(
                num_scalar_prefetch=0,
                grid=(num_tiles,),
                in_specs=[
                    pl.BlockSpec((block_rows, D), lambda i: (i, 0)),
                    pl.BlockSpec((ts, D), lambda i: (i, 0)),
                ],
                out_specs=pl.BlockSpec((block_rows, D), lambda i: (i, 0)),
            ),
            compiler_params=compiler_params,
        )(x_flat, pe_in)
        return out_flat.reshape(S, B, D)

    # Training mode: stateless (inverted) dropout.  RNG stream differs from PyTorch's,
    # but the keep-probability matches and the mask is reproducible across tilings.
    seed_arr = jnp.array([seed], dtype=jnp.int32)
    kernel = functools.partial(_pe_add_dropout_kernel, batch=B, p_drop=float(dropout_p))
    out_flat = pl.pallas_call(
        kernel,
        out_shape=jax.ShapeDtypeStruct((S * B, D), x.dtype),
        grid_spec=pltpu.PrefetchScalarGridSpec(
            num_scalar_prefetch=1,  # seed lands in SMEM before the grid runs
            grid=(num_tiles,),
            in_specs=[
                pl.BlockSpec((block_rows, D), lambda i, s: (i, 0)),
                pl.BlockSpec((ts, D), lambda i, s: (i, 0)),
            ],
            out_specs=pl.BlockSpec((block_rows, D), lambda i, s: (i, 0)),
        ),
        compiler_params=compiler_params,
    )(seed_arr, x_flat, pe_in)
    return out_flat.reshape(S, B, D)


# ---------------------------------------------------------------------------
# Demo / self-test (small shapes, deterministic)
# ---------------------------------------------------------------------------
if __name__ == "__main__":
    seq_len, batch, d_model = 16, 2, 32
    max_len = 64  # small but > seq_len; same formula as max_len=5000

    key = jax.random.PRNGKey(0)
    x = jax.random.normal(key, (seq_len, batch, d_model), dtype=jnp.float32)

    pe_table = make_positional_encoding_table(d_model, max_len)
    ref = x + pe_table[:seq_len][:, None, :]

    # Eval mode, forced small tile -> 2-step grid exercises the tiled pipeline.
    out = jax.block_until_ready(
        positional_encoding(x, pe_table, dropout_p=0.1, training=False, tile_s=8)
    )
    assert out.shape == x.shape and out.dtype == x.dtype
    assert jnp.allclose(out, ref, atol=1e-6), "tiled eval path mismatch vs reference"

    # Eval mode with the automatically derived tile size (also split into >= 2 tiles).
    out_auto = jax.block_until_ready(
        positional_encoding(x, pe_table, dropout_p=0.1, training=False)
    )
    assert jnp.allclose(out_auto, ref, atol=1e-6), "auto-tile eval path mismatch"

    # Training mode: exact check against the same hash-derived mask.
    p, seed = 0.1, 1234
    out_tr = jax.block_until_ready(
        positional_encoding(x, pe_table, dropout_p=p, training=True, seed=seed, tile_s=8)
    )
    keep = dropout_keep_mask(seed, seq_len * batch, d_model, p).reshape(seq_len, batch, d_model)
    expected = jnp.where(keep, ref * (1.0 / (1.0 - p)), 0.0).astype(x.dtype)
    assert jnp.allclose(out_tr, expected, atol=1e-5), "dropout path mismatch vs hash reference"

    # Dropout mask must be invariant to the tile size (hash of the global element id).
    out_tr_auto = jax.block_until_ready(
        positional_encoding(x, pe_table, dropout_p=p, training=True, seed=seed)
    )
    assert jnp.allclose(out_tr, out_tr_auto, atol=1e-5), "dropout mask depends on tiling"

    print("KERNEL_OK")
</pallas_src>

<mosaic_0001>
module attributes {stable_mosaic.version = 11 : i64} {
  func.func @_pe_add_kernel(%arg0: i32, %arg1: memref<16x32xf32, #tpu.memory_space<vmem>>, %arg2: memref<8x32xf32, #tpu.memory_space<vmem>>, %arg3: memref<16x32xf32, #tpu.memory_space<vmem>>) attributes {dimension_semantics = [#tpu.dimension_semantics<parallel>], iteration_bounds = array<i64: 2>, scalar_prefetch = 0 : i64, scratch_operands = 0 : i64, tpu.core_type = #tpu.core_type<tc>, window_params = [{transform_indices = @transform_0, window_bounds = array<i64: 16, 32>}, {transform_indices = @transform_1, window_bounds = array<i64: 8, 32>}, {transform_indices = @transform_2, window_bounds = array<i64: 16, 32>}]} {
    %c0 = arith.constant 0 : index
    %c0_0 = arith.constant 0 : index
    %0 = vector.load %arg2[%c0, %c0_0] : memref<8x32xf32, #tpu.memory_space<vmem>>, vector<8x32xf32>
    %1 = vector.shape_cast %0 : vector<8x32xf32> to vector<8x1x32xf32>
    %2 = vector.broadcast %1 : vector<8x1x32xf32> to vector<8x2x32xf32>
    %3 = vector.shape_cast %2 : vector<8x2x32xf32> to vector<16x32xf32>
    %c0_1 = arith.constant 0 : index
    %c0_2 = arith.constant 0 : index
    %4 = vector.load %arg1[%c0_1, %c0_2] : memref<16x32xf32, #tpu.memory_space<vmem>>, vector<16x32xf32>
    %5 = arith.addf %4, %3 : vector<16x32xf32>
    %c0_3 = arith.constant 0 : index
    %c0_4 = arith.constant 0 : index
    %6 = vector.load %arg3[%c0_3, %c0_4] : memref<16x32xf32, #tpu.memory_space<vmem>>, vector<16x32xf32>
    tpu.vector_store %arg3[%c0_3, %c0_4], %5 {strides = array<i32>} : memref<16x32xf32, #tpu.memory_space<vmem>>, vector<16x32xf32>,
    return
  }
  func.func @transform_0(%arg0: i32) -> (i32, i32) {
    %c0_i32 = arith.constant 0 : i32
    %c0_i32_0 = arith.constant 0 : i32
    return %arg0, %c0_i32 : i32, i32
  }
  func.func @transform_1(%arg0: i32) -> (i32, i32) {
    %c0_i32 = arith.constant 0 : i32
    %c0_i32_0 = arith.constant 0 : i32
    return %arg0, %c0_i32 : i32, i32
  }
  func.func @transform_2(%arg0: i32) -> (i32, i32) {
    %c0_i32 = arith.constant 0 : i32
    %c0_i32_0 = arith.constant 0 : i32
    return %arg0, %c0_i32 : i32, i32
  }
}

</mosaic_0001>

<llo_original>
// kernel: tpu_custom_call.1
$region0: #{tpu_custom_call.1}
  #allocation0 [shape = 'u32[]', space=smem, size = 0x4, offset = 0x4, fixed_abs, tag = 'smem constant byte address 0x4 - core index']
  #allocation1 [shape = 'u32[144,128]{1,0:T(1,128)}', space=vmem, size = 0x12000, scoped, tag = 'internal scratch']
  %s0 = inlined_call_operand.vmem [shape: f32[32,32], index: 0, kind: input, shape index: {}]
  %s1 = inlined_call_operand.vmem [shape: f32[64,32], index: 1, kind: input, shape index: {}]
  %s2 = inlined_call_operand.hbm [shape: f32[32,32], index: 2, kind: output, shape index: {}]
  %s3 = sld [smem:[#allocation0]]
  $region41: #{tpu_custom_call.1} parent=0
    _
  %s5 = ssub.s32 1, %s3
  %s6 = scalar_select 0, %s5, %s3
  $region1: #{tpu_custom_call.1} parent=0
    #allocation2 [shape = 'u8[16384]{0}', space=vmem, size = 0x4000, scoped, tag = 'output window, operand 0']
    #allocation3 [shape = 's32[2]{0}', space=sflag, size = 0x8, scoped, tag = 'scoped memory for tpu_custom_call.1']
    %7 = vsyncpa [#allocation3], 0
    %s8 = scalar_lea.sflag [#allocation3], 1
    %9 = vsyncpa %s8, 0
    loop: start=0, step=1, limit=4
    $region2: #{tpu_custom_call.1} parent=1 // loop_pre_header
      _
    $region3: #{tpu_custom_call.1} parent=1 // loop_header
      %s11 = sphi 0, %s15
      %p12 = scmp.ge.s32.totalorder %s11, 4
      %s21 = sphi 0, %s23
      %s24 = sphi 0, %s21
      %s25 = sphi 0, %s24
      %s41 = sphi 0, %s25
      %s47 = sphi 0, %s49
      %s50 = sphi 0, %s47
      %s51 = sphi 0, %s50
      %s67 = sphi 0, %s51
      %s73 = sphi 0, %s75
      %s76 = sphi 0, %s73
      %s77 = sphi 0, %s76
      %s93 = sphi 0, %s77
    $region4: #{tpu_custom_call.1} parent=1 // loop_header_branch
      %14 = sbr.rel (%p12) target = $region8
    $region5: #{tpu_custom_call.1} parent=1 // loop_body
      %s16 = ssub.s32 %s11, 1
      %s17 = ssub.s32 %s11, 2
      %s18 = sadd.s32 %s11, 1
      %s19 = ssub.s32 %s11, %s18
      %p20 = scmp.eq.s32.totalorder %s19, 0
      %s22 = sadd.s32 %s21, 1
      %s23 = scalar_select %p20, %s21, %s22
      %p26 = pneg %p20
      %p27 = scmp.eq.s32.totalorder %s11, 1
      %p28 = por %p26, %p27
      %p29 = scmp.ne.s32.totalorder %s21, %s24
      %p30 = scmp.eq.s32.totalorder %s11, 0
      %p31 = por %p29, %p30
      %p32 = scmp.ne.s32.totalorder %s21, %s24
      %p33 = scmp.eq.s32.totalorder %s16, 1
      %p34 = por %p32, %p33
      %p35 = scmp.ne.s32.totalorder %s24, %s25
      %p36 = scmp.eq.s32.totalorder %s16, 0
      %p37 = por %p35, %p36
      %p38 = scmp.ne.s32.totalorder %s24, %s25
      %p39 = scmp.eq.s32.totalorder %s17, 1
      %p40 = por %p38, %p39
      %p42 = scmp.ne.s32.totalorder %s25, %s41
      %p43 = scmp.eq.s32.totalorder %s17, 0
      %p44 = por %p42, %p43
      %s45 = ssub.s32 %s11, %s18
      %p46 = scmp.eq.s32.totalorder %s45, 0
      %s48 = sadd.s32 %s47, 1
      %s49 = scalar_select %p46, %s47, %s48
      %p52 = pneg %p46
      %p53 = scmp.eq.s32.totalorder %s11, 1
      %p54 = por %p52, %p53
      %p55 = scmp.ne.s32.totalorder %s47, %s50
      %p56 = scmp.eq.s32.totalorder %s11, 0
      %p57 = por %p55, %p56
      %p58 = scmp.ne.s32.totalorder %s47, %s50
      %p59 = scmp.eq.s32.totalorder %s16, 1
      %p60 = por %p58, %p59
      %p61 = scmp.ne.s32.totalorder %s50, %s51
      %p62 = scmp.eq.s32.totalorder %s16, 0
      %p63 = por %p61, %p62
      %p64 = scmp.ne.s32.totalorder %s50, %s51
      %p65 = scmp.eq.s32.totalorder %s17, 1
      %p66 = por %p64, %p65
      %p68 = scmp.ne.s32.totalorder %s51, %s67
      %p69 = scmp.eq.s32.totalorder %s17, 0
      %p70 = por %p68, %p69
      %s71 = ssub.s32 %s11, %s18
      %p72 = scmp.eq.s32.totalorder %s71, 0
      %s74 = sadd.s32 %s73, 1
      %s75 = scalar_select %p72, %s73, %s74
      %p78 = pneg %p72
      %p79 = scmp.eq.s32.totalorder %s11, 1
      %p80 = por %p78, %p79
      %p81 = scmp.ne.s32.totalorder %s73, %s76
      %p82 = scmp.eq.s32.totalorder %s11, 0
      %p83 = por %p81, %p82
      %p84 = scmp.ne.s32.totalorder %s73, %s76
      %p85 = scmp.eq.s32.totalorder %s16, 1
      %p86 = por %p84, %p85
      %p87 = scmp.ne.s32.totalorder %s76, %s77
      %p88 = scmp.eq.s32.totalorder %s16, 0
      %p89 = por %p87, %p88
      %p90 = scmp.ne.s32.totalorder %s76, %s77
      %p91 = scmp.eq.s32.totalorder %s17, 1
      %p92 = por %p90, %p91
      %p94 = scmp.ne.s32.totalorder %s77, %s93
      %p95 = scmp.eq.s32.totalorder %s17, 0
      %p96 = por %p94, %p95
      %p97 = scmp.le.s32.totalorder 1, %s11
      %p98 = scmp.lt.s32.totalorder %s11, 3
      %p99 = pnand %p97, %p98
      %p100 = pneg %p99
      // Predicated region
      $region9: #{tpu_custom_call.1} parent=5 // pred_check
        _
      $region10: #{tpu_custom_call.1} parent=5 // pred_check_branch
        %102 = sbr.rel (%p99) target = $region12
      $region11: #{tpu_custom_call.1} parent=5 // pred_region
        %s103 = ssub.s32 %s11, 1
      $region12: #{tpu_custom_call.1} parent=5 // pred_fallthru
        _
      %p104 = scmp.lt.s32.totalorder %s11, 2
      // Predicated region
      $region13: #{tpu_custom_call.1} parent=5 // pred_check
        %p105 = pneg %p104
      $region14: #{tpu_custom_call.1} parent=5 // pred_check_branch
        %107 = sbr.rel (%p105) target = $region16
      $region15: #{tpu_custom_call.1} parent=5 // pred_region
        // Predicated region
        $region17: #{tpu_custom_call.1} parent=15 // pred_check
          %p108 = pneg %p31
        $region18: #{tpu_custom_call.1} parent=15 // pred_check_branch
          %110 = sbr.rel (%p108) target = $region20
        $region19: #{tpu_custom_call.1} parent=15 // pred_region
          %s111 = smul.u32 2, %s11
          %p112 = scmp.lt.s32.totalorder %s111, 3
          %s113 = scalar_select %p112, %s111, 3
          %s114 = smul.addr %s113, 8
          %s115 = scalar_lea.vmem %s0, %s114
          %s116 = smul.u32 2, %s11
        $region20: #{tpu_custom_call.1} parent=15 // pred_fallthru
          _
        // Predicated region
        $region21: #{tpu_custom_call.1} parent=15 // pred_check
          %p117 = pneg %p57
        $region22: #{tpu_custom_call.1} parent=15 // pred_check_branch
          %119 = sbr.rel (%p117) target = $region24
        $region23: #{tpu_custom_call.1} parent=15 // pred_region
          %p120 = scmp.lt.s32.totalorder %s11, 7
          %s121 = scalar_select %p120, %s11, 7
          %s122 = smul.addr %s121, 8
          %s123 = scalar_lea.vmem %s1, %s122
        $region24: #{tpu_custom_call.1} parent=15 // pred_fallthru
          _
      $region16: #{tpu_custom_call.1} parent=5 // pred_fallthru
        _
      %p124 = scmp.le.s32.totalorder 1, %s11
      %p125 = scmp.lt.s32.totalorder %s11, 3
      %p126 = pnand %p124, %p125
      %p127 = pneg %p126
      // Predicated region
      $region25: #{tpu_custom_call.1} parent=5 // pred_check
        _
      $region26: #{tpu_custom_call.1} parent=5 // pred_check_branch
        %129 = sbr.rel (%p126) target = $region28
      $region27: #{tpu_custom_call.1} parent=5 // pred_region
        %s130 = ssub.s32 %s11, 1
        %s131 = smul.u32 2, %s16
        %p132 = scmp.lt.s32.totalorder %s131, 3
        %s133 = scalar_select %p132, %s131, 3
        %s134 = smul.addr %s133, 8
        %s135 = scalar_lea.vmem %s0, %s134
        %p136 = pneg %p37
        %p137 = pneg %p34
        %p138 = scmp.lt.s32.totalorder %s16, 7
        %s139 = scalar_select %p138, %s16, 7
        %s140 = smul.addr %s139, 8
        %s141 = scalar_lea.vmem %s1, %s140
        %p142 = pneg %p63
        %p143 = pneg %p60
        %p144 = pneg %p89
        %p145 = pneg %p86
        %s146 = sand.u32 %s76, 1
        %s147 = scalar_lea.sflag [#allocation3], %s146
        %s148 = sand.u32 %s76, 1
        %s149 = smul.addr %s148, 16
        %s150 = scalar_lea.vmem [#allocation2], %s149
        %s151 = smul.u32 2, %s16
        %p152 = scmp.lt.s32.totalorder %s151, 3
        %s153 = scalar_select %p152, %s151, 3
        %s154 = smul.addr %s153, 8
        %s155 = scalar_lea.vmem %s0, %s154
        %s156 = smul.u32 2, %s16
        %p157 = scmp.lt.s32.totalorder %s16, 7
        %s158 = scalar_select %p157, %s16, 7
        %s159 = smul.addr %s158, 8
        %s160 = scalar_lea.vmem %s1, %s159
        %s161 = smul.u32 2, %s16
        %v162 = vld [vmem:[%s160] sm:$0xff]
        %v164 = vcombine.high %v162, %v162
        %v166 = vunpack.c.l.s4 1966171168
        %v167 = vunpack.c.0.s8 %v166
        %v168 = vlaneseq
        %v169 = vshrl.u32 %v168, 7
        %v170 = vsub.s32 %v167, %v169
        %v171 = vrot.slane %v162, %v170
        %v173 = vunpack.c.l.s4 1966171168
        %v174 = vunpack.c.0.s8 %v173
        %v175 = vlaneseq
        %v176 = vshrl.u32 %v175, 7
        %v177 = vsub.s32 %v174, %v176
        %v178 = vrot.slane %v164, %v177
        %v179 = vcombine.high %v171, %v171
        %v180 = vcombine.high %v178, %v178
        %v182 = vunpack.c.l.s4 1966171168
        %v183 = vunpack.c.0.s8 %v182
        %v184 = vlaneseq
        %v185 = vshrl.u32 %v184, 7
        %v186 = vsub.s32 %v183, %v185
        %v187 = vrot.slane %v171, %v186
        %v189 = vunpack.c.l.s4 1966171168
        %v190 = vunpack.c.0.s8 %v189
        %v191 = vlaneseq
        %v192 = vshrl.u32 %v191, 7
        %v193 = vsub.s32 %v190, %v192
        %v194 = vrot.slane %v178, %v193
        %v196 = vunpack.c.l.s4 1966171168
        %v197 = vunpack.c.0.s8 %v196
        %v198 = vlaneseq
        %v199 = vshrl.u32 %v198, 7
        %v200 = vsub.s32 %v197, %v199
        %v201 = vrot.slane %v179, %v200
        %v203 = vunpack.c.l.s4 1966171168
        %v204 = vunpack.c.0.s8 %v203
        %v205 = vlaneseq
        %v206 = vshrl.u32 %v205, 7
        %v207 = vsub.s32 %v204, %v206
        %v208 = vrot.slane %v180, %v207
        %v209 = vcombine.high %v187, %v187
        %v210 = vcombine.high %v194, %v194
        %v211 = vcombine.high %v201, %v201
        %v212 = vcombine.high %v208, %v208
        %v213 = vlaneseq
        %v214 = vshrl.u32 %v213, 7
        %v215 = vsub.s32 0, %v214
        %v216 = vrot.slane %v187, %v215
        %v217 = vlaneseq
        %v218 = vshrl.u32 %v217, 7
        %v219 = vsub.s32 0, %v218
        %v220 = vrot.slane %v201, %v219
        %v221 = vlaneseq
        %v222 = vshrl.u32 %v221, 7
        %v223 = vsub.s32 0, %v222
        %v224 = vrot.slane %v209, %v223
        %v225 = vlaneseq
        %v226 = vshrl.u32 %v225, 7
        %v227 = vsub.s32 0, %v226
        %v228 = vrot.slane %v211, %v227
        %v229 = vlaneseq
        %v230 = vshrl.u32 %v229, 7
        %v231 = vsub.s32 0, %v230
        %v232 = vrot.slane %v194, %v231
        %v233 = vlaneseq
        %v234 = vshrl.u32 %v233, 7
        %v235 = vsub.s32 0, %v234
        %v236 = vrot.slane %v208, %v235
        %v237 = vlaneseq
        %v238 = vshrl.u32 %v237, 7
        %v239 = vsub.s32 0, %v238
        %v240 = vrot.slane %v210, %v239
        %v241 = vlaneseq
        %v242 = vshrl.u32 %v241, 7
        %v243 = vsub.s32 0, %v242
        %v244 = vrot.slane %v212, %v243
        %v245 = vld [vmem:[%s155] sm:$0xff]
        %v246 = vld [vmem:[%s155 + $0x8] sm:$0xff]
        %v247 = vcombine.low %v216, %v220
        %v248 = vcombine.low %v224, %v228
        %v250 = vunpack.c.l.s4 1983009808
        %v251 = vunpack.c.0.s8 %v250
        %v252 = vlaneseq
        %v253 = vshrl.u32 %v252, 7
        %v254 = vsub.s32 %v251, %v253
        %v255 = vrot.slane %v247, %v254
        %v257 = vunpack.c.l.s4 1983009808
        %v258 = vunpack.c.0.s8 %v257
        %v259 = vlaneseq
        %v260 = vshrl.u32 %v259, 7
        %v261 = vsub.s32 %v258, %v260
        %v262 = vrot.slane %v248, %v261
        %v263 = vcombine.low %v255, %v262
        %v264 = vcombine.low %v232, %v236
        %v265 = vcombine.low %v240, %v244
        %v267 = vunpack.c.l.s4 1983009808
        %v268 = vunpack.c.0.s8 %v267
        %v269 = vlaneseq
        %v270 = vshrl.u32 %v269, 7
        %v271 = vsub.s32 %v268, %v270
        %v272 = vrot.slane %v264, %v271
        %v274 = vunpack.c.l.s4 1983009808
        %v275 = vunpack.c.0.s8 %v274
        %v276 = vlaneseq
        %v277 = vshrl.u32 %v276, 7
        %v278 = vsub.s32 %v275, %v277
        %v279 = vrot.slane %v265, %v278
        %v280 = vcombine.low %v272, %v279
        %v283 = vadd.f32 %v245, %v263
        %v284 = vadd.f32 %v246, %v280
        %vm285 = vcmask 261120
        %286 = vst.msk [vmem:[%s150] sm:$0xff] %vm285, %v283
        %287 = vst.msk [vmem:[%s150 + $0x8] sm:$0xff] %vm285, %v284
        %s288 = sand.u32 %s76, 1
        %s289 = scalar_lea.sflag [#allocation3], %s288
        %s290 = sand.u32 %s76, 1
        %s291 = smul.addr %s290, 16
        %s292 = scalar_lea.vmem [#allocation2], %s291
        // Predicated region
        $region29: #{tpu_custom_call.1} parent=27 // pred_check
          %p293 = pneg %p86
        $region30: #{tpu_custom_call.1} parent=27 // pred_check_branch
          %295 = sbr.rel (%p293) target = $region32
        $region31: #{tpu_custom_call.1} parent=27 // pred_region
          %s296 = smul.u32 2, %s16
          %s298 = ssub.s32 256, 256
          %299 = vsyncadd %s289, %s298
          %s300 = smul.addr %s296, 128
          %s301 = scalar_lea.hbm %s2, %s300
          %s302 = sshll.u32 %s292, 4
          %s303 = int_to_ptr.vmem [resolvable:$true] %s302
          %308 = dma.vmem_to_hbm [thread:$0]  %s303, 256, %s301, %s289, 128, 128, 8
        $region32: #{tpu_custom_call.1} parent=27 // pred_fallthru
          _
      $region28: #{tpu_custom_call.1} parent=5 // pred_fallthru
        _
      %p309 = scmp.le.s32.totalorder 2, %s11
      // Predicated region
      $region33: #{tpu_custom_call.1} parent=5 // pred_check
        %p310 = pneg %p309
      $region34: #{tpu_custom_call.1} parent=5 // pred_check_branch
        %312 = sbr.rel (%p310) target = $region36
      $region35: #{tpu_custom_call.1} parent=5 // pred_region
        %s313 = ssub.s32 %s11, 2
        // Predicated region
        $region37: #{tpu_custom_call.1} parent=35 // pred_check
          %p314 = pneg %p92
        $region38: #{tpu_custom_call.1} parent=35 // pred_check_branch
          %316 = sbr.rel (%p314) target = $region40
        $region39: #{tpu_custom_call.1} parent=35 // pred_region
          %s317 = sand.u32 %s77, 1
          %s318 = scalar_lea.sflag [#allocation3], %s317
          %s319 = sand.u32 %s77, 1
          %s320 = smul.addr %s319, 16
          %s321 = scalar_lea.vmem [#allocation2], %s320
          %322 = dma.done %s318, 256
        $region40: #{tpu_custom_call.1} parent=35 // pred_fallthru
          _
      $region36: #{tpu_custom_call.1} parent=5 // pred_fallthru
        _
    $region6: #{tpu_custom_call.1} parent=1 // loop_footer
      %s15 = sadd.s32 1, %s11
    $region7: #{tpu_custom_call.1} parent=1 // loop_footer_branch
      %10 = sbr.rel target = $region3
    $region8: #{tpu_custom_call.1} parent=1 // loop_exit
      _
    %323 = vsyncpa [#allocation3], 1
    %s324 = scalar_lea.sflag [#allocation3], 1
    %325 = vsyncpa %s324, 1

</llo_original>
